<compile_context>
chip_gen: v7x
topology: tpu7x:2x2x1
jax: 0.10.0
libtpu: 0.0.40
codegen_flags: <defaults>
</compile_context>

<pallas_src>
import functools

import jax
import jax.numpy as jnp
from jax import lax
from jax.experimental import pallas as pl
from jax.experimental.pallas import tpu as pltpu

_LANES = 128            # lane-dense last dim
_SUBLANES = 8           # f32 sublane tile
_MAX_TILE_ROWS = 8192   # 8192 x 128 x 4B = 4 MiB per f32 buffer (~8 MiB double-buffered)


def _round_up(x, m):
    return ((x + m - 1) // m) * m


def _lsgan_partial_kernel(tgt_ref, x_ref, o_ref, *, tile_rows, steps_per_par, n_rows,
                          need_mask):
    """Accumulate sum((x - tgt)^2) of this parallel chunk into a resident (1,8,128) block.

    tgt_ref: (1,1) f32 in SMEM (scalar target)
    x_ref:   (tile_rows, 128) tile of pred (native dtype), upcast in-kernel
    o_ref:   (1, 8, 128) f32 partial-sum block for this chunk (accumulator, resident
             across the whole "arbitrary" reduction axis)
    """
    p = pl.program_id(0)          # parallel chunk (maps to a TensorCore on v7x)
    s = pl.program_id(1)          # reduction step within the chunk

    @pl.when(s == 0)
    def _():
        o_ref[...] = jnp.zeros_like(o_ref)

    x = x_ref[...].astype(jnp.float32)
    d = x - tgt_ref[0, 0]                   # scalar broadcast from SMEM
    sq = d * d

    def _accumulate(vals):
        # Reduce only along the vreg-row axis (pure VPU adds, no XLU), keep (8,128).
        part = vals.reshape(tile_rows // _SUBLANES, _SUBLANES, _LANES).sum(axis=0)
        o_ref[...] += part.reshape(1, _SUBLANES, _LANES)

    if need_mask:
        # Unclamped global row-block index -> number of valid rows in this block.
        # (A fully past-the-end step has valid <= 0 and contributes exactly 0.)
        g = p * steps_per_par + s
        valid = n_rows - g * tile_rows

        @pl.when(valid >= tile_rows)        # fully-valid block: unmasked fast path
        def _():
            _accumulate(sq)

        @pl.when(valid < tile_rows)         # ragged / duplicated past-the-end block
        def _():
            rows = lax.broadcasted_iota(jnp.int32, sq.shape, 0)
            _accumulate(jnp.where(rows < valid, sq, 0.0))
    else:
        _accumulate(sq)


def lsgan_loss(pred, is_real, target_real=1.0, target_fake=0.0, *,
               max_tile_rows=_MAX_TILE_ROWS):
    """Pallas implementation of LSGANLoss()(pred, is_real) == MSE(pred, target)."""
    numel = int(pred.size)
    assert numel > 0
    # Static python branch, mirroring the torch `if is_real:`.
    target = float(target_real) if is_real else float(target_fake)

    flat = pred.reshape(-1)                  # free for contiguous input; native dtype kept

    n_rows = numel // _LANES
    rem = numel - n_rows * _LANES

    if n_rows == 0:
        # Fewer than 128 elements: a pallas_call is pure launch overhead; fuse in XLA.
        x = flat.astype(jnp.float32)
        return jnp.sum((x - target) ** 2) / numel

    if rem == 0:
        main = flat
        tail_sq_sum = jnp.float32(0.0)
    else:
        # 128-aligned prefix goes through the kernel; the <128-element tail is folded in
        # with a tiny fused XLA expression (no full-tensor jnp.pad copy).
        main = lax.slice(flat, (0,), (n_rows * _LANES,))
        tail = lax.slice(flat, (n_rows * _LANES,), (numel,)).astype(jnp.float32)
        tail_sq_sum = jnp.sum((tail - target) ** 2)

    x2d = main.reshape(n_rows, _LANES)       # lane-dense (rows, 128) view

    # Row tile: multiple of 8 sublanes, capped at max_tile_rows (4 MiB per f32 buffer).
    max_tile_rows = max(_SUBLANES, (int(max_tile_rows) // _SUBLANES) * _SUBLANES)
    tile_rows = min(max_tile_rows, _round_up(n_rows, _SUBLANES))
    n_row_blocks = pl.cdiv(n_rows, tile_rows)

    # Split the row-block range over a leading "parallel" axis so both TensorCores are
    # used on v7x; on 1-TC chips (v5e/v6e) this axis just iterates sequentially.
    n_par = 2 if n_row_blocks >= 2 else 1
    steps_per_par = pl.cdiv(n_row_blocks, n_par)

    # Masking is only *emitted* when some block overhangs the array (ragged last block
    # and/or one duplicated, clamped past-the-end step when n_row_blocks is odd).
    need_mask = (n_par * steps_per_par * tile_rows) != n_rows

    tgt = jnp.full((1, 1), target, dtype=jnp.float32)

    def x_index_map(p, s):
        # Clamp so an (at most one) past-the-end step re-reads the last block instead of
        # issuing an out-of-bounds DMA; its contribution is zeroed by the in-kernel mask.
        return (jnp.minimum(p * steps_per_par + s, n_row_blocks - 1), 0)

    kernel = functools.partial(
        _lsgan_partial_kernel,
        tile_rows=tile_rows, steps_per_par=steps_per_par, n_rows=n_rows,
        need_mask=need_mask)

    partials = pl.pallas_call(
        kernel,
        out_shape=jax.ShapeDtypeStruct((n_par, _SUBLANES, _LANES), jnp.float32),
        grid_spec=pltpu.PrefetchScalarGridSpec(
            num_scalar_prefetch=0,
            grid=(n_par, steps_per_par),
            in_specs=[
                pl.BlockSpec(memory_space=pltpu.MemorySpace.SMEM),       # (1,1) target
                pl.BlockSpec((tile_rows, _LANES), x_index_map),          # pred tiles
            ],
            out_specs=pl.BlockSpec((1, _SUBLANES, _LANES), lambda p, s: (p, 0, 0)),
        ),
        compiler_params=pltpu.CompilerParams(
            dimension_semantics=("parallel", "arbitrary"),               # reduction last
        ),
    )(tgt, x2d)

    # Tiny final reduction (n_par * 8 * 128 elements) + tail + divide by GLOBAL count.
    return (jnp.sum(partials) + tail_sq_sum) / numel


if __name__ == "__main__":
    key = jax.random.PRNGKey(0)
    k1, k2, k3, k4, k5 = jax.random.split(key, 5)

    # Case 1/2: small "patch discriminator"-like output, both GAN targets (single block).
    pred = jax.random.normal(k1, (2, 4, 16, 16), dtype=jnp.float32)
    loss_real = jax.block_until_ready(lsgan_loss(pred, True))
    loss_fake = jax.block_until_ready(lsgan_loss(pred, False))
    ref_real = jnp.mean((pred - 1.0) ** 2)
    ref_fake = jnp.mean(pred ** 2)
    assert jnp.allclose(loss_real, ref_real, atol=1e-5, rtol=1e-5), (loss_real, ref_real)
    assert jnp.allclose(loss_fake, ref_fake, atol=1e-5, rtol=1e-5), (loss_fake, ref_fake)

    # Case 3: ragged numel (numel % 128 != 0) -> XLA tail + masked overhanging block.
    pred_r = jax.random.normal(k2, (3, 5, 7, 11), dtype=jnp.float32)
    loss_r = jax.block_until_ready(lsgan_loss(pred_r, True))
    ref_r = jnp.mean((pred_r - 1.0) ** 2)
    assert jnp.allclose(loss_r, ref_r, atol=1e-5, rtol=1e-5), (loss_r, ref_r)

    # Case 4: multi-block grid with 2 parallel chunks, evenly divided (no masking).
    pred_b = jax.random.normal(k3, (2, 2, 256, 256), dtype=jnp.float32)
    loss_b = jax.block_until_ready(lsgan_loss(pred_b, False, max_tile_rows=64))
    ref_b = jnp.mean(pred_b ** 2)
    assert jnp.allclose(loss_b, ref_b, atol=1e-5, rtol=1e-5), (loss_b, ref_b)

    # Case 5: odd number of row blocks -> exercises the clamped past-the-end step.
    pred_o = jax.random.normal(k4, (2, 4, 64, 80), dtype=jnp.float32)
    loss_o = jax.block_until_ready(lsgan_loss(pred_o, True, max_tile_rows=64))
    ref_o = jnp.mean((pred_o - 1.0) ** 2)
    assert jnp.allclose(loss_o, ref_o, atol=1e-5, rtol=1e-5), (loss_o, ref_o)

    # Case 6: ragged last row-block inside a multi-block grid (n_rows % tile_rows != 0).
    pred_g = jax.random.normal(k5, (2, 4, 40, 80), dtype=jnp.float32)
    loss_g = jax.block_until_ready(lsgan_loss(pred_g, False, max_tile_rows=64))
    ref_g = jnp.mean(pred_g ** 2)
    assert jnp.allclose(loss_g, ref_g, atol=1e-5, rtol=1e-5), (loss_g, ref_g)

    print("KERNEL_OK")
</pallas_src>

<mosaic_0001>
module attributes {stable_mosaic.version = 11 : i64} {
  func.func @_lsgan_partial_kernel(%arg0: i32, %arg1: i32, %arg2: memref<1x1xf32, #tpu.memory_space<smem>>, %arg3: memref<16x128xf32, #tpu.memory_space<vmem>>, %arg4: memref<1x8x128xf32, #tpu.memory_space<vmem>>) attributes {dimension_semantics = [#tpu.dimension_semantics<parallel>, #tpu.dimension_semantics<arbitrary>], iteration_bounds = array<i64: 1, 1>, scalar_prefetch = 0 : i64, scratch_operands = 0 : i64, tpu.core_type = #tpu.core_type<tc>, window_params = [{transform_indices = @transform_0, window_bounds = array<i64: 1, 1>}, {transform_indices = @transform_1, window_bounds = array<i64: 16, 128>}, {transform_indices = @transform_2, window_bounds = array<i64: 1, 8, 128>}]} {
    %c0_i32 = arith.constant 0 : i32
    %0 = arith.cmpi eq, %arg1, %c0_i32 : i32
    %1 = arith.extui %0 : i1 to i32
    %c0_i32_0 = arith.constant 0 : i32
    %2 = arith.cmpi ne, %1, %c0_i32_0 : i32
    scf.if %2 {
      %cst_10 = arith.constant 0.000000e+00 : f32
      %14 = vector.broadcast %cst_10 : f32 to vector<1x8x128xf32>
      %c0_11 = arith.constant 0 : index
      %c0_12 = arith.constant 0 : index
      %c0_13 = arith.constant 0 : index
      %15 = vector.load %arg4[%c0_11, %c0_12, %c0_13] : memref<1x8x128xf32, #tpu.memory_space<vmem>>, vector<1x8x128xf32>
      tpu.vector_store %arg4[%c0_11, %c0_12, %c0_13], %14 {strides = array<i32>} : memref<1x8x128xf32, #tpu.memory_space<vmem>>, vector<1x8x128xf32>,
    } else {
    }
    %c0 = arith.constant 0 : index
    %c0_1 = arith.constant 0 : index
    %3 = vector.load %arg3[%c0, %c0_1] : memref<16x128xf32, #tpu.memory_space<vmem>>, vector<16x128xf32>
    %c0_2 = arith.constant 0 : index
    %c0_3 = arith.constant 0 : index
    %4 = memref.load %arg2[%c0_2, %c0_3] : memref<1x1xf32, #tpu.memory_space<smem>>
    %5 = vector.broadcast %4 : f32 to vector<16x128xf32>
    %6 = arith.subf %3, %5 : vector<16x128xf32>
    %7 = arith.mulf %6, %6 : vector<16x128xf32>
    %8 = vector.shape_cast %7 : vector<16x128xf32> to vector<2x8x128xf32>
    %cst = arith.constant dense<0.000000e+00> : vector<8x128xf32>
    %9 = vector.multi_reduction <add>, %8, %cst [0] : vector<2x8x128xf32> to vector<8x128xf32>
    %c0_4 = arith.constant 0 : index
    %c0_5 = arith.constant 0 : index
    %c0_6 = arith.constant 0 : index
    %10 = vector.load %arg4[%c0_4, %c0_5, %c0_6] : memref<1x8x128xf32, #tpu.memory_space<vmem>>, vector<1x8x128xf32>
    %11 = vector.shape_cast %9 : vector<8x128xf32> to vector<1x8x128xf32>
    %12 = arith.addf %10, %11 : vector<1x8x128xf32>
    %c0_7 = arith.constant 0 : index
    %c0_8 = arith.constant 0 : index
    %c0_9 = arith.constant 0 : index
    %13 = vector.load %arg4[%c0_7, %c0_8, %c0_9] : memref<1x8x128xf32, #tpu.memory_space<vmem>>, vector<1x8x128xf32>
    tpu.vector_store %arg4[%c0_7, %c0_8, %c0_9], %12 {strides = array<i32>} : memref<1x8x128xf32, #tpu.memory_space<vmem>>, vector<1x8x128xf32>,
    return
  }
  func.func @transform_0(%arg0: i32, %arg1: i32) -> (i32, i32) {
    %c0_i32 = arith.constant 0 : i32
    %c0_i32_0 = arith.constant 0 : i32
    %c0_i32_1 = arith.constant 0 : i32
    return %c0_i32, %c0_i32_0 : i32, i32
  }
  func.func @transform_1(%arg0: i32, %arg1: i32) -> (i32, i32) {
    %c1_i32 = arith.constant 1 : i32
    %0 = arith.muli %arg0, %c1_i32 : i32
    %1 = arith.addi %0, %arg1 : i32
    %c0_i32 = arith.constant 0 : i32
    %2 = arith.minsi %1, %c0_i32 : i32
    %c0_i32_0 = arith.constant 0 : i32
    %c0_i32_1 = arith.constant 0 : i32
    return %2, %c0_i32_0 : i32, i32
  }
  func.func @transform_2(%arg0: i32, %arg1: i32) -> (i32, i32, i32) {
    %c0_i32 = arith.constant 0 : i32
    %c0_i32_0 = arith.constant 0 : i32
    %c0_i32_1 = arith.constant 0 : i32
    return %arg0, %c0_i32, %c0_i32_0 : i32, i32, i32
  }
}

</mosaic_0001>

<llo_original>
// kernel: tpu_custom_call.1
$region0: #{tpu_custom_call.1}
  #allocation0 [shape = 'u32[]', space=smem, size = 0x4, offset = 0x4, fixed_abs, tag = 'smem constant byte address 0x4 - core index']
  #allocation1 [shape = 'u32[144,128]{1,0:T(1,128)}', space=vmem, size = 0x12000, scoped, tag = 'internal scratch']
  #allocation2 [shape = 'f32[1,1]{1,0:T(1,128)S(6)}', space=smem, size = 0x200, scoped, tag = 'scoped memory for tpu_custom_call.1']
  %s0 = inlined_call_operand.<no memory space> [shape: f32[1,1], index: 0, kind: input, shape index: {}]
  %s1 = inlined_call_operand.hbm [shape: f32[16,128], index: 1, kind: input, shape index: {}]
  %s2 = inlined_call_operand.hbm [shape: f32[1,8,128], index: 2, kind: output, shape index: {}]
  %s3 = sld [smem:[#allocation0]]
  $region26: #{tpu_custom_call.1} parent=0
    _
  %s5 = ssub.s32 1, %s3
  %s6 = scalar_select 0, %s5, %s3
  %7 = sst [smem:[#allocation2]] %s0
  $region1: #{tpu_custom_call.1} parent=0
    #allocation3 [shape = 'u8[8192]{0}', space=vmem, size = 0x2000, scoped, tag = 'input window, operand 1, single buffered']
    #allocation4 [shape = 's32[1]{0}', space=sflag, size = 0x4, scoped, tag = 'scoped memory for tpu_custom_call.1']
    #allocation5 [shape = 's32[1]{0}', space=sflag, size = 0x4, scoped, tag = 'scoped memory for tpu_custom_call.1']
    #allocation6 [shape = 'u8[4096]{0}', space=vmem, size = 0x1000, scoped, tag = 'output window, operand 0, single buffered']
    %8 = vsyncpa [#allocation4], 0
    %9 = vsyncpa [#allocation5], 0
    // Predicated region
    $region2: #{tpu_custom_call.1} parent=1 // pred_check
      _
    $region3: #{tpu_custom_call.1} parent=1 // pred_check_branch
      %11 = sbr.rel (0) target = $region5
    $region4: #{tpu_custom_call.1} parent=1 // pred_region
      _
    $region5: #{tpu_custom_call.1} parent=1 // pred_fallthru
      _
    // Predicated region
    $region6: #{tpu_custom_call.1} parent=1 // pred_check
      _
    $region7: #{tpu_custom_call.1} parent=1 // pred_check_branch
      %13 = sbr.rel (0) target = $region9
    $region8: #{tpu_custom_call.1} parent=1 // pred_region
      %s14 = sadd.s32 0, 0
      %p15 = scmp.lt.s32.totalorder %s14, 0
      %s16 = scalar_select %p15, %s14, 0
      %s17 = smul.u32 2, %s16
      %s19 = ssub.s32 256, 256
      %20 = vsyncadd [#allocation4], %s19
      %s21 = smul.addr %s17, 128
      %s22 = scalar_lea.hbm %s1, %s21
      %s23 = sshll.u32 [#allocation3], 4
      %s24 = int_to_ptr.vmem [resolvable:$true] %s23
      %29 = dma.hbm_to_vmem [thread:$0]  %s22, 256, %s24, [#allocation4], 128, 128, 8
    $region9: #{tpu_custom_call.1} parent=1 // pred_fallthru
      _
    // Predicated region
    $region10: #{tpu_custom_call.1} parent=1 // pred_check
      _
    $region11: #{tpu_custom_call.1} parent=1 // pred_check_branch
      %31 = sbr.rel (0) target = $region13
    $region12: #{tpu_custom_call.1} parent=1 // pred_region
      %32 = dma.done [#allocation4], 256
    $region13: #{tpu_custom_call.1} parent=1 // pred_fallthru
      _
    %s33 = sadd.s32 0, 0
    %p34 = scmp.lt.s32.totalorder %s33, 0
    %s35 = scalar_select %p34, %s33, 0
    %s36 = smul.u32 2, %s35
    %p37 = scmp.eq.s32.totalorder 0, 0
    // Predicated region
    $region14: #{tpu_custom_call.1} parent=1 // pred_check
      %p38 = pneg %p37
    $region15: #{tpu_custom_call.1} parent=1 // pred_check_branch
      %40 = sbr.rel (%p38) target = $region17
    $region16: #{tpu_custom_call.1} parent=1 // pred_region
      %41 = vst [vmem:[#allocation6] sm:$0xff] 0.0
    $region17: #{tpu_custom_call.1} parent=1 // pred_fallthru
      _
    %v42 = vld [vmem:[#allocation3] sm:$0xff]
    %v43 = vld [vmem:[#allocation3 + $0x8] sm:$0xff]
    %s44 = sld [smem:[#allocation2]]
    %v45 = vstv %s44
    %v46 = vsub.f32 %v42, %v45
    %v47 = vsub.f32 %v43, %v45
    %v48 = vmul.f32 %v46, %v46
    %v49 = vmul.f32 %v47, %v47
    %v50 = vadd.f32 %v48, %v49
    %v51 = vld [vmem:[#allocation6] sm:$0xff]
    %v52 = vadd.f32 %v51, %v50
    %53 = vst [vmem:[#allocation6] sm:$0xff] %v52
    // Predicated region
    $region18: #{tpu_custom_call.1} parent=1 // pred_check
      _
    $region19: #{tpu_custom_call.1} parent=1 // pred_check_branch
      %55 = sbr.rel (0) target = $region21
    $region20: #{tpu_custom_call.1} parent=1 // pred_region
      %s57 = ssub.s32 128, 128
      %58 = vsyncadd [#allocation5], %s57
      %s60 = sshll.u32 [#allocation6], 4
      %s61 = int_to_ptr.vmem [resolvable:$true] %s60
      %63 = dma.vmem_to_hbm [thread:$0]  %s61, 128, %s2, [#allocation5]
    $region21: #{tpu_custom_call.1} parent=1 // pred_fallthru
      _
    // Predicated region
    $region22: #{tpu_custom_call.1} parent=1 // pred_check
      _
    $region23: #{tpu_custom_call.1} parent=1 // pred_check_branch
      %65 = sbr.rel (0) target = $region25
    $region24: #{tpu_custom_call.1} parent=1 // pred_region
      %66 = dma.done [#allocation5], 128
    $region25: #{tpu_custom_call.1} parent=1 // pred_fallthru
      _
    %67 = vsyncpa [#allocation4], 1
    %68 = vsyncpa [#allocation5], 1

</llo_original>
